<compile_context>
chip_gen: v6e
topology: v6e:2x2x1
jax: 0.10.0
libtpu: 0.0.40
codegen_flags: <defaults>
</compile_context>

<pallas_src>
import jax
import jax.numpy as jnp
from jax.experimental import pallas as pl
from jax.experimental.pallas import tpu as pltpu

LANE = 128


def _round_up(x: int, m: int) -> int:
    return ((x + m - 1) // m) * m


def _vmem_budget_bytes() -> int:
    """Usable per-core VMEM budget for this chip generation.

    ~96 MiB on v5e/v6e (128 MiB physical), ~48 MiB on v7x (64 MiB physical).
    """
    try:
        cap = int(pltpu.get_tpu_info().vmem_capacity_bytes)
    except Exception:
        cap = 64 * 1024 * 1024  # conservative (v7x-sized) fallback
    return int(min((cap * 3) // 4, 100 * 1024 * 1024))


# ------------------------------- kernels ----------------------------------


def _mlp_kernel_resident(x_ref, w1_ref, b1_ref, w2_ref, b2_ref, o_ref):
    # x_ref: (TB, D_in_p)   w1_ref: (D_in_p, H_p)   b1_ref: (1, H_p)   [f32]
    # w2_ref: (H_p, D_out_p)   b2_ref: (1, D_out_p) [f32]   o_ref: (TB, D_out_p)
    h = jnp.dot(x_ref[...], w1_ref[...], preferred_element_type=jnp.float32)
    h = jnp.maximum(h + b1_ref[...], 0.0)          # f32 epilogue on the VPU
    if h.dtype != w2_ref.dtype:
        h = h.astype(w2_ref.dtype)                 # single cast back for MXU 2
    y = jnp.dot(h, w2_ref[...], preferred_element_type=jnp.float32)
    o_ref[...] = (y + b2_ref[...]).astype(o_ref.dtype)


def _mlp_kernel_ktiled(x_ref, w1_ref, b1_ref, w2_ref, b2_ref, o_ref, acc_ref):
    # Hidden dim tiled on grid axis 1 (reduction, "arbitrary"); f32 accumulator.
    k = pl.program_id(1)

    @pl.when(k == 0)
    def _():
        acc_ref[...] = jnp.zeros_like(acc_ref)

    h = jnp.dot(x_ref[...], w1_ref[...], preferred_element_type=jnp.float32)
    h = jnp.maximum(h + b1_ref[...], 0.0)          # ReLU is per hidden column
    if h.dtype != w2_ref.dtype:
        h = h.astype(w2_ref.dtype)
    acc_ref[...] += jnp.dot(h, w2_ref[...], preferred_element_type=jnp.float32)

    @pl.when(k == pl.num_programs(1) - 1)
    def _():
        o_ref[...] = (acc_ref[...] + b2_ref[...]).astype(o_ref.dtype)


# ----------------------------- host wrappers -------------------------------


def prepare_params(w1, b1, w2, b2, *, use_bf16: bool = True):
    """One-time parameter prep: pad feature dims to lane multiples + cast.

    Zero padding is exact: padded K-columns contribute 0 to the dots, padded
    hidden columns give relu(0 + 0) = 0, padded output columns are sliced off.
    """
    d_in, h = w1.shape
    d_out = w2.shape[1]
    d_in_p, h_p, d_out_p = (_round_up(d, LANE) for d in (d_in, h, d_out))
    compute_dtype = jnp.bfloat16 if use_bf16 else jnp.float32

    w1_p = jnp.pad(w1.astype(compute_dtype), ((0, d_in_p - d_in), (0, h_p - h)))
    w2_p = jnp.pad(w2.astype(compute_dtype), ((0, h_p - h), (0, d_out_p - d_out)))
    # Biases stay f32 (added inside the f32 accumulator), shaped (1, F).
    b1_p = jnp.pad(b1.astype(jnp.float32), (0, h_p - h)).reshape(1, h_p)
    b2_p = jnp.pad(b2.astype(jnp.float32), (0, d_out_p - d_out)).reshape(1, d_out_p)

    return dict(w1=w1_p, b1=b1_p, w2=w2_p, b2=b2_p,
                dims=(d_in, h, d_out), compute_dtype=compute_dtype)


def _plan_tiles(B, d_in_p, h_p, d_out_p, csz, osz, pack, budget, block_b,
                force_k_tiled, hidden_tile):
    block_b = max(int(block_b), pack)
    cands = {c for c in (128, 256, 512, 1024) if c <= block_b}
    cands.add(min(_round_up(B, pack), _round_up(block_b, pack)))
    # Prefer the tile minimizing batch-padding waste; tie-break toward larger.
    tb_cands = sorted(cands, key=lambda t: (_round_up(B, t) - B, -t))

    def resident_need(tb):
        return (2 * tb * d_in_p * csz            # x tiles (double-buffered)
                + 2 * tb * d_out_p * osz         # out tiles (double-buffered)
                + d_in_p * h_p * csz             # W1 (single-buffered)
                + h_p * d_out_p * csz            # W2 (single-buffered)
                + (h_p + d_out_p) * 4            # biases (f32)
                + tb * h_p * 4 + tb * d_out_p * 4)   # f32 intermediates

    if not force_k_tiled:
        for tb in tb_cands:
            if resident_need(tb) <= budget:
                return dict(mode="resident", tb=tb, th=h_p)

    def ktiled_need(tb, th):
        return (2 * tb * d_in_p * csz + 2 * tb * d_out_p * osz
                + 2 * d_in_p * th * csz          # W1 tile (double-buffered)
                + 2 * th * d_out_p * csz         # W2 tile (double-buffered)
                + 2 * th * 4 + d_out_p * 4       # bias tiles
                + tb * d_out_p * 4               # f32 accumulator scratch
                + tb * th * 4)                   # f32 intermediate

    th_start = h_p
    if hidden_tile is not None:
        th_start = min(_round_up(int(hidden_tile), LANE), h_p)
    for tb in tb_cands:
        th = th_start
        while th >= LANE:
            if h_p % th == 0 and ktiled_need(tb, th) <= budget:
                return dict(mode="ktiled", tb=tb, th=th)
            th -= LANE
    # Last resort: smallest tiles (may still exceed the soft budget).
    return dict(mode="ktiled", tb=min(tb_cands), th=LANE)


def simple_nn_forward(x, params, *, block_b: int = 512, out_dtype=None,
                      force_k_tiled: bool = False, hidden_tile=None):
    """Fused MLP forward. x: (B, D_in); params from prepare_params()."""
    d_in, _, d_out = params["dims"]
    assert x.shape[1] == d_in
    compute_dtype = params["compute_dtype"]
    w1_p, b1_p, w2_p, b2_p = params["w1"], params["b1"], params["w2"], params["b2"]
    d_in_p, h_p = w1_p.shape
    d_out_p = w2_p.shape[1]

    out_dtype = jnp.dtype(out_dtype) if out_dtype is not None else x.dtype
    csz = jnp.dtype(compute_dtype).itemsize
    osz = jnp.dtype(out_dtype).itemsize
    # bf16 vregs pack 16 rows per sublane group (8 for f32).
    pack = 16 if csz == 2 else 8

    B = x.shape[0]
    budget = _vmem_budget_bytes()
    plan = _plan_tiles(B, d_in_p, h_p, d_out_p, csz, osz, pack, budget,
                       block_b, force_k_tiled, hidden_tile)
    mode, tb, th = plan["mode"], plan["tb"], plan["th"]
    b_p = _round_up(B, tb)

    # Per-call x prep: cast/pad only when actually needed.
    x_p = x if x.dtype == compute_dtype else x.astype(compute_dtype)
    if (b_p, d_in_p) != (B, d_in):
        x_p = jnp.pad(x_p, ((0, b_p - B), (0, d_in_p - d_in)))

    flops = 2 * b_p * (d_in_p * h_p + h_p * d_out_p)
    bytes_accessed = (b_p * d_in_p * csz + d_in_p * h_p * csz
                      + h_p * d_out_p * csz + (h_p + d_out_p) * 4
                      + b_p * d_out_p * osz)
    cost = pl.CostEstimate(flops=flops, transcendentals=0,
                           bytes_accessed=bytes_accessed)

    resident = pl.Buffered(1)  # constant-index blocks: no double buffering

    if mode == "resident":
        grid = (b_p // tb,)
        grid_spec = pltpu.PrefetchScalarGridSpec(
            num_scalar_prefetch=0,
            grid=grid,
            in_specs=[
                pl.BlockSpec((tb, d_in_p), lambda i: (i, 0)),      # x: batch-tiled
                pl.BlockSpec((d_in_p, h_p), lambda i: (0, 0),
                             pipeline_mode=resident),              # W1 resident
                pl.BlockSpec((1, h_p), lambda i: (0, 0),
                             pipeline_mode=resident),              # b1 resident
                pl.BlockSpec((h_p, d_out_p), lambda i: (0, 0),
                             pipeline_mode=resident),              # W2 resident
                pl.BlockSpec((1, d_out_p), lambda i: (0, 0),
                             pipeline_mode=resident),              # b2 resident
            ],
            out_specs=pl.BlockSpec((tb, d_out_p), lambda i: (i, 0)),
        )
        kernel = _mlp_kernel_resident
        semantics = ("parallel",)
    else:
        grid = (b_p // tb, h_p // th)
        grid_spec = pltpu.PrefetchScalarGridSpec(
            num_scalar_prefetch=0,
            grid=grid,
            in_specs=[
                pl.BlockSpec((tb, d_in_p), lambda i, k: (i, 0)),   # x
                pl.BlockSpec((d_in_p, th), lambda i, k: (0, k)),   # W1 hidden-tile
                pl.BlockSpec((1, th), lambda i, k: (0, k)),        # b1 hidden-tile
                pl.BlockSpec((th, d_out_p), lambda i, k: (k, 0)),  # W2 hidden-tile
                pl.BlockSpec((1, d_out_p), lambda i, k: (0, 0),
                             pipeline_mode=resident),              # b2 resident
            ],
            out_specs=pl.BlockSpec((tb, d_out_p), lambda i, k: (i, 0)),
            scratch_shapes=[pltpu.VMEM((tb, d_out_p), jnp.float32)],
        )
        kernel = _mlp_kernel_ktiled
        semantics = ("parallel", "arbitrary")

    out_padded = pl.pallas_call(
        kernel,
        out_shape=jax.ShapeDtypeStruct((b_p, d_out_p), out_dtype),
        grid_spec=grid_spec,
        compiler_params=pltpu.CompilerParams(
            dimension_semantics=semantics,
            vmem_limit_bytes=budget,
        ),
        cost_estimate=cost,
    )(x_p, w1_p, b1_p, w2_p, b2_p)

    if (b_p, d_out_p) != (B, d_out):
        return out_padded[:B, :d_out]
    return out_padded


def init_params(key, input_size, hidden_size, output_size):
    # Deterministic init mimicking nn.Linear's U(-1/sqrt(fan_in), 1/sqrt(fan_in)).
    k1, k2, k3, k4 = jax.random.split(key, 4)
    bound1 = 1.0 / jnp.sqrt(input_size)
    bound2 = 1.0 / jnp.sqrt(hidden_size)
    w1 = jax.random.uniform(k1, (input_size, hidden_size), jnp.float32,
                            -bound1, bound1)
    b1 = jax.random.uniform(k2, (hidden_size,), jnp.float32, -bound1, bound1)
    w2 = jax.random.uniform(k3, (hidden_size, output_size), jnp.float32,
                            -bound2, bound2)
    b2 = jax.random.uniform(k4, (output_size,), jnp.float32, -bound2, bound2)
    return w1, b1, w2, b2


if __name__ == "__main__":
    input_size, hidden_size, output_size = 16, 32, 8
    batch = 8

    key = jax.random.PRNGKey(0)
    kx, kp = jax.random.split(key)
    x = jax.random.normal(kx, (batch, input_size), jnp.float32)
    w1, b1, w2, b2 = init_params(kp, input_size, hidden_size, output_size)
    ref = jnp.maximum(x @ w1 + b1, 0.0) @ w2 + b2

    # f32 MXU path (debug/accuracy mode): exact correctness check.
    params_f32 = prepare_params(w1, b1, w2, b2, use_bf16=False)
    out_f32 = jax.block_until_ready(simple_nn_forward(x, params_f32))
    assert out_f32.shape == (batch, output_size)
    assert jnp.allclose(out_f32, ref, atol=1e-5, rtol=1e-5)

    # bf16 MXU path (default throughput mode): looser tolerance.
    params_bf16 = prepare_params(w1, b1, w2, b2, use_bf16=True)
    out_bf16 = jax.block_until_ready(simple_nn_forward(x, params_bf16))
    assert out_bf16.shape == (batch, output_size)
    assert jnp.allclose(out_bf16, ref, atol=2e-2, rtol=2e-2)

    # K-tiled (hidden-dim accumulator) fallback path, exercised explicitly with
    # hidden=256 and a 128-wide hidden tile (2 reduction steps), f32 for an
    # exact check.
    hidden2 = 256
    w1b, b1b, w2b, b2b = init_params(kp, input_size, hidden2, output_size)
    ref2 = jnp.maximum(x @ w1b + b1b, 0.0) @ w2b + b2b
    params2 = prepare_params(w1b, b1b, w2b, b2b, use_bf16=False)
    out2 = jax.block_until_ready(
        simple_nn_forward(x, params2, force_k_tiled=True, hidden_tile=128))
    assert out2.shape == (batch, output_size)
    assert jnp.allclose(out2, ref2, atol=1e-4, rtol=1e-4)

    print("KERNEL_OK")
</pallas_src>

<mosaic_0001>
module attributes {stable_mosaic.version = 11 : i64} {
  func.func @_mlp_kernel_resident(%arg0: i32, %arg1: memref<8x128xf32, #tpu.memory_space<vmem>>, %arg2: memref<128x128xf32, #tpu.memory_space<vmem>>, %arg3: memref<1x128xf32, #tpu.memory_space<vmem>>, %arg4: memref<128x128xf32, #tpu.memory_space<vmem>>, %arg5: memref<1x128xf32, #tpu.memory_space<vmem>>, %arg6: memref<8x128xf32, #tpu.memory_space<vmem>>) attributes {dimension_semantics = [#tpu.dimension_semantics<parallel>], iteration_bounds = array<i64: 1>, scalar_prefetch = 0 : i64, scratch_operands = 0 : i64, tpu.core_type = #tpu.core_type<tc>, window_params = [{transform_indices = @transform_0, window_bounds = array<i64: 8, 128>}, {pipeline_mode = #tpu.pipeline_mode<synchronous>, transform_indices = @transform_1, window_bounds = array<i64: 128, 128>}, {pipeline_mode = #tpu.pipeline_mode<synchronous>, transform_indices = @transform_2, window_bounds = array<i64: 1, 128>}, {pipeline_mode = #tpu.pipeline_mode<synchronous>, transform_indices = @transform_3, window_bounds = array<i64: 128, 128>}, {pipeline_mode = #tpu.pipeline_mode<synchronous>, transform_indices = @transform_4, window_bounds = array<i64: 1, 128>}, {transform_indices = @transform_5, window_bounds = array<i64: 8, 128>}]} {
    %c0 = arith.constant 0 : index
    %c0_0 = arith.constant 0 : index
    %0 = vector.load %arg1[%c0, %c0_0] : memref<8x128xf32, #tpu.memory_space<vmem>>, vector<8x128xf32>
    %c0_1 = arith.constant 0 : index
    %c0_2 = arith.constant 0 : index
    %1 = vector.load %arg2[%c0_1, %c0_2] : memref<128x128xf32, #tpu.memory_space<vmem>>, vector<128x128xf32>
    %cst = arith.constant dense<0.000000e+00> : vector<8x128xf32>
    %2 = tpu.matmul %0, %1, %cst {dimension_numbers = #tpu.dot_dimension_numbers<[1], [0], [0], [1], [0, 0, 1, 1], [], []>} : vector<8x128xf32>, vector<128x128xf32>, vector<8x128xf32> -> vector<8x128xf32>
    %c0_3 = arith.constant 0 : index
    %c0_4 = arith.constant 0 : index
    %3 = vector.load %arg3[%c0_3, %c0_4] : memref<1x128xf32, #tpu.memory_space<vmem>>, vector<1x128xf32>
    %4 = vector.broadcast %3 : vector<1x128xf32> to vector<8x128xf32>
    %5 = arith.addf %2, %4 : vector<8x128xf32>
    %cst_5 = arith.constant 0.000000e+00 : f32
    %6 = vector.broadcast %cst_5 : f32 to vector<8x128xf32>
    %7 = arith.maximumf %5, %6 : vector<8x128xf32>
    %c0_6 = arith.constant 0 : index
    %c0_7 = arith.constant 0 : index
    %8 = vector.load %arg4[%c0_6, %c0_7] : memref<128x128xf32, #tpu.memory_space<vmem>>, vector<128x128xf32>
    %cst_8 = arith.constant dense<0.000000e+00> : vector<8x128xf32>
    %9 = tpu.matmul %7, %8, %cst_8 {dimension_numbers = #tpu.dot_dimension_numbers<[1], [0], [0], [1], [0, 0, 1, 1], [], []>} : vector<8x128xf32>, vector<128x128xf32>, vector<8x128xf32> -> vector<8x128xf32>
    %c0_9 = arith.constant 0 : index
    %c0_10 = arith.constant 0 : index
    %10 = vector.load %arg5[%c0_9, %c0_10] : memref<1x128xf32, #tpu.memory_space<vmem>>, vector<1x128xf32>
    %11 = vector.broadcast %10 : vector<1x128xf32> to vector<8x128xf32>
    %12 = arith.addf %9, %11 : vector<8x128xf32>
    %c0_11 = arith.constant 0 : index
    %c0_12 = arith.constant 0 : index
    %13 = vector.load %arg6[%c0_11, %c0_12] : memref<8x128xf32, #tpu.memory_space<vmem>>, vector<8x128xf32>
    tpu.vector_store %arg6[%c0_11, %c0_12], %12 {strides = array<i32>} : memref<8x128xf32, #tpu.memory_space<vmem>>, vector<8x128xf32>,
    return
  }
  func.func @transform_0(%arg0: i32) -> (i32, i32) {
    %c0_i32 = arith.constant 0 : i32
    %c0_i32_0 = arith.constant 0 : i32
    return %arg0, %c0_i32 : i32, i32
  }
  func.func @transform_1(%arg0: i32) -> (i32, i32) {
    %c0_i32 = arith.constant 0 : i32
    %c0_i32_0 = arith.constant 0 : i32
    %c0_i32_1 = arith.constant 0 : i32
    return %c0_i32, %c0_i32_0 : i32, i32
  }
  func.func @transform_2(%arg0: i32) -> (i32, i32) {
    %c0_i32 = arith.constant 0 : i32
    %c0_i32_0 = arith.constant 0 : i32
    %c0_i32_1 = arith.constant 0 : i32
    return %c0_i32, %c0_i32_0 : i32, i32
  }
  func.func @transform_3(%arg0: i32) -> (i32, i32) {
    %c0_i32 = arith.constant 0 : i32
    %c0_i32_0 = arith.constant 0 : i32
    %c0_i32_1 = arith.constant 0 : i32
    return %c0_i32, %c0_i32_0 : i32, i32
  }
  func.func @transform_4(%arg0: i32) -> (i32, i32) {
    %c0_i32 = arith.constant 0 : i32
    %c0_i32_0 = arith.constant 0 : i32
    %c0_i32_1 = arith.constant 0 : i32
    return %c0_i32, %c0_i32_0 : i32, i32
  }
  func.func @transform_5(%arg0: i32) -> (i32, i32) {
    %c0_i32 = arith.constant 0 : i32
    %c0_i32_0 = arith.constant 0 : i32
    return %arg0, %c0_i32 : i32, i32
  }
}

</mosaic_0001>

<llo_original>
// kernel: tpu_custom_call.1
$region0: #{tpu_custom_call.1}
  #allocation0 [shape = 'u32[]', space=smem, size = 0x4, offset = 0x4, fixed_abs, tag = 'smem constant byte address 0x4 - core index']
  #allocation1 [shape = 'u32[144,128]{1,0:T(1,128)}', space=vmem, size = 0x12000, scoped, tag = 'internal scratch']
  %s0 = inlined_call_operand.hbm [shape: f32[8,128], index: 0, kind: input, shape index: {}]
  %s1 = inlined_call_operand.hbm [shape: f32[128,128], index: 1, kind: input, shape index: {}]
  %s2 = inlined_call_operand.vmem [shape: f32[1,128], index: 2, kind: input, shape index: {}]
  %s3 = inlined_call_operand.hbm [shape: f32[128,128], index: 3, kind: input, shape index: {}]
  %s4 = inlined_call_operand.vmem [shape: f32[1,128], index: 4, kind: input, shape index: {}]
  %s5 = inlined_call_operand.hbm [shape: f32[8,128], index: 5, kind: output, shape index: {}]
  %s6 = sld [smem:[#allocation0]]
  $region42: #{tpu_custom_call.1} parent=0
    _
  %s8 = ssub.s32 1, %s6
  %s9 = scalar_select 0, %s8, %s6
  $region1: #{tpu_custom_call.1} parent=0
    #allocation2 [shape = 'u8[4096]{0}', space=vmem, size = 0x1000, scoped, tag = 'input window, operand 0, single buffered']
    #allocation3 [shape = 's32[1]{0}', space=sflag, size = 0x4, scoped, tag = 'scoped memory for tpu_custom_call.1']
    #allocation4 [shape = 's32[1]{0}', space=sflag, size = 0x4, scoped, tag = 'scoped memory for tpu_custom_call.1']
    #allocation5 [shape = 'u8[65536]{0}', space=vmem, size = 0x10000, scoped, tag = 'input window, operand 1, single buffered']
    #allocation6 [shape = 's32[1]{0}', space=sflag, size = 0x4, scoped, tag = 'scoped memory for tpu_custom_call.1']
    #allocation7 [shape = 'u8[65536]{0}', space=vmem, size = 0x10000, scoped, tag = 'input window, operand 3, single buffered']
    #allocation8 [shape = 'u8[4096]{0}', space=vmem, size = 0x1000, scoped, tag = 'output window, operand 0, single buffered']
    %10 = vsyncpa [#allocation3], 0
    %11 = vsyncpa [#allocation6], 0
    %12 = vsyncpa [#allocation4], 0
    // Predicated region
    $region2: #{tpu_custom_call.1} parent=1 // pred_check
      _
    $region3: #{tpu_custom_call.1} parent=1 // pred_check_branch
      %14 = sbr.rel (0) target = $region5
    $region4: #{tpu_custom_call.1} parent=1 // pred_region
      %s16 = ssub.s32 128, 128
      %17 = vsyncadd [#allocation3], %s16
      %s19 = sshll.u32 [#allocation2], 4
      %s20 = int_to_ptr.vmem [resolvable:$true] %s19
      %22 = dma.hbm_to_vmem [thread:$0]  %s0, 128, %s20, [#allocation3]
    $region5: #{tpu_custom_call.1} parent=1 // pred_fallthru
      _
    // Predicated region
    $region6: #{tpu_custom_call.1} parent=1 // pred_check
      _
    $region7: #{tpu_custom_call.1} parent=1 // pred_check_branch
      %24 = sbr.rel (0) target = $region9
    $region8: #{tpu_custom_call.1} parent=1 // pred_region
      %s26 = ssub.s32 2048, 2048
      %27 = vsyncadd [#allocation6], %s26
      %s28 = sshll.u32 [#allocation5], 4
      %s29 = int_to_ptr.vmem [resolvable:$true] %s28
      %34 = dma.hbm_to_vmem [thread:$0]  %s1, 2048, %s29, [#allocation6], 128, 128, 8
    $region9: #{tpu_custom_call.1} parent=1 // pred_fallthru
      _
    // Predicated region
    $region10: #{tpu_custom_call.1} parent=1 // pred_check
      _
    $region11: #{tpu_custom_call.1} parent=1 // pred_check_branch
      %36 = sbr.rel (0) target = $region13
    $region12: #{tpu_custom_call.1} parent=1 // pred_region
      _
    $region13: #{tpu_custom_call.1} parent=1 // pred_fallthru
      _
    // Predicated region
    $region14: #{tpu_custom_call.1} parent=1 // pred_check
      _
    $region15: #{tpu_custom_call.1} parent=1 // pred_check_branch
      %38 = sbr.rel (0) target = $region17
    $region16: #{tpu_custom_call.1} parent=1 // pred_region
      %s40 = ssub.s32 2048, 2048
      %41 = vsyncadd [#allocation6], %s40
      %s42 = sshll.u32 [#allocation7], 4
      %s43 = int_to_ptr.vmem [resolvable:$true] %s42
      %48 = dma.hbm_to_vmem [thread:$0]  %s3, 2048, %s43, [#allocation6], 128, 128, 8
    $region17: #{tpu_custom_call.1} parent=1 // pred_fallthru
      _
    // Predicated region
    $region18: #{tpu_custom_call.1} parent=1 // pred_check
      _
    $region19: #{tpu_custom_call.1} parent=1 // pred_check_branch
      %50 = sbr.rel (0) target = $region21
    $region20: #{tpu_custom_call.1} parent=1 // pred_region
      _
    $region21: #{tpu_custom_call.1} parent=1 // pred_fallthru
      _
    // Predicated region
    $region22: #{tpu_custom_call.1} parent=1 // pred_check
      _
    $region23: #{tpu_custom_call.1} parent=1 // pred_check_branch
      %52 = sbr.rel (0) target = $region25
    $region24: #{tpu_custom_call.1} parent=1 // pred_region
      %53 = dma.done [#allocation3], 128
    $region25: #{tpu_custom_call.1} parent=1 // pred_fallthru
      _
    // Predicated region
    $region26: #{tpu_custom_call.1} parent=1 // pred_check
      _
    $region27: #{tpu_custom_call.1} parent=1 // pred_check_branch
      %55 = sbr.rel (0) target = $region29
    $region28: #{tpu_custom_call.1} parent=1 // pred_region
      %56 = dma.done [#allocation6], 2048
    $region29: #{tpu_custom_call.1} parent=1 // pred_fallthru
      _
    // Predicated region
    $region30: #{tpu_custom_call.1} parent=1 // pred_check
      _
    $region31: #{tpu_custom_call.1} parent=1 // pred_check_branch
      %58 = sbr.rel (0) target = $region33
    $region32: #{tpu_custom_call.1} parent=1 // pred_region
      %59 = dma.done [#allocation6], 2048
    $region33: #{tpu_custom_call.1} parent=1 // pred_fallthru
      _
    %v60 = vld [vmem:[#allocation2] sm:$0xff]
    %v61 = vld [vmem:[#allocation5] sm:$0xff]
    %v62 = vld [vmem:[#allocation5 + $0x8] sm:$0xff]
    %v63 = vld [vmem:[#allocation5 + $0x10] sm:$0xff]
    %v64 = vld [vmem:[#allocation5 + $0x18] sm:$0xff]
    %v65 = vld [vmem:[#allocation5 + $0x20] sm:$0xff]
    %v66 = vld [vmem:[#allocation5 + $0x28] sm:$0xff]
    %v67 = vld [vmem:[#allocation5 + $0x30] sm:$0xff]
    %v68 = vld [vmem:[#allocation5 + $0x38] sm:$0xff]
    %v69 = vld [vmem:[#allocation5 + $0x40] sm:$0xff]
    %v70 = vld [vmem:[#allocation5 + $0x48] sm:$0xff]
    %v71 = vld [vmem:[#allocation5 + $0x50] sm:$0xff]
    %v72 = vld [vmem:[#allocation5 + $0x58] sm:$0xff]
    %v73 = vld [vmem:[#allocation5 + $0x60] sm:$0xff]
    %v74 = vld [vmem:[#allocation5 + $0x68] sm:$0xff]
    %v75 = vld [vmem:[#allocation5 + $0x70] sm:$0xff]
    %v76 = vld [vmem:[#allocation5 + $0x78] sm:$0xff]
    %v77 = vld [vmem:[%s2] sm:$0x1]
    %v79 = vlaneseq
    %v80 = vshrl.u32 %v79, 7
    %v81 = vsub.s32 0, %v80
    %v82 = vrot.slane %v77, %v81
    %84 = vmatprep.subr.mxu0 0.0
    %85 = vmatpush1.msra.mxu0 %v76
    %86 = vmatprep.subr.mxu0 0.0
    %87 = vmatpush1.msra.mxu0 %v75
    %88 = vmatprep.subr.mxu0 0.0
    %89 = vmatpush1.msra.mxu0 %v74
    %90 = vmatprep.subr.mxu0 0.0
    %91 = vmatpush1.msra.mxu0 %v73
    %92 = vmatprep.subr.mxu0 0.0
    %93 = vmatpush1.msra.mxu0 %v72
    %94 = vmatprep.subr.mxu0 0.0
    %95 = vmatpush1.msra.mxu0 %v71
    %96 = vmatprep.subr.mxu0 0.0
    %97 = vmatpush1.msra.mxu0 %v70
    %98 = vmatprep.subr.mxu0 0.0
    %99 = vmatpush1.msra.mxu0 %v69
    %100 = vmatprep.subr.mxu0 0.0
    %101 = vmatpush1.msra.mxu0 %v68
    %102 = vmatprep.subr.mxu0 0.0
    %103 = vmatpush1.msra.mxu0 %v67
    %104 = vmatprep.subr.mxu0 0.0
    %105 = vmatpush1.msra.mxu0 %v66
    %106 = vmatprep.subr.mxu0 0.0
    %107 = vmatpush1.msra.mxu0 %v65
    %108 = vmatprep.subr.mxu0 0.0
    %109 = vmatpush1.msra.mxu0 %v64
    %110 = vmatprep.subr.mxu0 0.0
    %111 = vmatpush1.msra.mxu0 %v63
    %112 = vmatprep.subr.mxu0 0.0
    %113 = vmatpush1.msra.mxu0 %v62
    %114 = vmatprep.subr.mxu0 0.0
    %115 = vmatpush1.msra.mxu0 %v61
    %116 = vmatprep.subr.mxu0 0.0
    %117 = vmatpush2.msra.mxu0 0.0
    %118 = vmatprep.subr.mxu0 0.0
    %119 = vmatpush2.msra.mxu0 0.0
    %120 = vmatprep.subr.mxu0 0.0
    %121 = vmatpush2.msra.mxu0 0.0
    %122 = vmatprep.subr.mxu0 0.0
    %123 = vmatpush2.msra.mxu0 0.0
    %124 = vmatprep.subr.mxu0 0.0
    %125 = vmatpush2.msra.mxu0 0.0
    %126 = vmatprep.subr.mxu0 0.0
    %127 = vmatpush2.msra.mxu0 0.0
    %128 = vmatprep.subr.mxu0 0.0
    %129 = vmatpush2.msra.mxu0 0.0
    %130 = vmatprep.subr.mxu0 0.0
    %131 = vmatpush2.msra.mxu0 0.0
    %132 = vmatprep.subr.mxu0 0.0
    %133 = vmatpush2.msra.mxu0 0.0
    %134 = vmatprep.subr.mxu0 0.0
    %135 = vmatpush2.msra.mxu0 0.0
    %136 = vmatprep.subr.mxu0 0.0
    %137 = vmatpush2.msra.mxu0 0.0
    %138 = vmatprep.subr.mxu0 0.0
    %139 = vmatpush2.msra.mxu0 0.0
    %140 = vmatprep.subr.mxu0 0.0
    %141 = vmatpush2.msra.mxu0 0.0
    %142 = vmatprep.subr.mxu0 0.0
    %143 = vmatpush2.msra.mxu0 0.0
    %144 = vmatprep.subr.mxu0 0.0
    %145 = vmatpush2.msra.mxu0 0.0
    %146 = vmatprep.subr.mxu0 0.0
    %147 = vmatpush2.msra.mxu0 0.0
    %148 = vmatprep.mubr.f32.mxu0 0.0
    %149 = vmatmul.mubr.f32.gmra.mxu0 %v60
    %v150 = vpop.f32.mrf.mxu0
    %v151 = vadd.f32 %v82, %v150
    %v152 = vpop.f32.mrf.mxu0
    %153 = vdwg.mxu0
    %v154 = vmax.f32 %v151, 0.0
    %v155 = vld [vmem:[#allocation7] sm:$0xff]
    %v156 = vld [vmem:[#allocation7 + $0x8] sm:$0xff]
    %v157 = vld [vmem:[#allocation7 + $0x10] sm:$0xff]
    %v158 = vld [vmem:[#allocation7 + $0x18] sm:$0xff]
    %v159 = vld [vmem:[#allocation7 + $0x20] sm:$0xff]
    %v160 = vld [vmem:[#allocation7 + $0x28] sm:$0xff]
    %v161 = vld [vmem:[#allocation7 + $0x30] sm:$0xff]
    %v162 = vld [vmem:[#allocation7 + $0x38] sm:$0xff]
    %v163 = vld [vmem:[#allocation7 + $0x40] sm:$0xff]
    %v164 = vld [vmem:[#allocation7 + $0x48] sm:$0xff]
    %v165 = vld [vmem:[#allocation7 + $0x50] sm:$0xff]
    %v166 = vld [vmem:[#allocation7 + $0x58] sm:$0xff]
    %v167 = vld [vmem:[#allocation7 + $0x60] sm:$0xff]
    %v168 = vld [vmem:[#allocation7 + $0x68] sm:$0xff]
    %v169 = vld [vmem:[#allocation7 + $0x70] sm:$0xff]
    %v170 = vld [vmem:[#allocation7 + $0x78] sm:$0xff]
    %v171 = vld [vmem:[%s4] sm:$0x1]
    %v173 = vlaneseq
    %v174 = vshrl.u32 %v173, 7
    %v175 = vsub.s32 0, %v174
    %v176 = vrot.slane %v171, %v175
    %178 = vmatprep.subr.mxu0 0.0
    %179 = vmatpush1.msra.mxu0 %v170
    %180 = vmatprep.subr.mxu0 0.0
    %181 = vmatpush1.msra.mxu0 %v169
    %182 = vmatprep.subr.mxu0 0.0
    %183 = vmatpush1.msra.mxu0 %v168
    %184 = vmatprep.subr.mxu0 0.0
    %185 = vmatpush1.msra.mxu0 %v167
    %186 = vmatprep.subr.mxu0 0.0
    %187 = vmatpush1.msra.mxu0 %v166
    %188 = vmatprep.subr.mxu0 0.0
    %189 = vmatpush1.msra.mxu0 %v165
    %190 = vmatprep.subr.mxu0 0.0
    %191 = vmatpush1.msra.mxu0 %v164
    %192 = vmatprep.subr.mxu0 0.0
    %193 = vmatpush1.msra.mxu0 %v163
    %194 = vmatprep.subr.mxu0 0.0
    %195 = vmatpush1.msra.mxu0 %v162
    %196 = vmatprep.subr.mxu0 0.0
    %197 = vmatpush1.msra.mxu0 %v161
    %198 = vmatprep.subr.mxu0 0.0
    %199 = vmatpush1.msra.mxu0 %v160
    %200 = vmatprep.subr.mxu0 0.0
    %201 = vmatpush1.msra.mxu0 %v159
    %202 = vmatprep.subr.mxu0 0.0
    %203 = vmatpush1.msra.mxu0 %v158
    %204 = vmatprep.subr.mxu0 0.0
    %205 = vmatpush1.msra.mxu0 %v157
    %206 = vmatprep.subr.mxu0 0.0
    %207 = vmatpush1.msra.mxu0 %v156
    %208 = vmatprep.subr.mxu0 0.0
    %209 = vmatpush1.msra.mxu0 %v155
    %210 = vmatprep.subr.mxu0 0.0
    %211 = vmatpush2.msra.mxu0 0.0
    %212 = vmatprep.subr.mxu0 0.0
    %213 = vmatpush2.msra.mxu0 0.0
    %214 = vmatprep.subr.mxu0 0.0
    %215 = vmatpush2.msra.mxu0 0.0
    %216 = vmatprep.subr.mxu0 0.0
    %217 = vmatpush2.msra.mxu0 0.0
    %218 = vmatprep.subr.mxu0 0.0
    %219 = vmatpush2.msra.mxu0 0.0
    %220 = vmatprep.subr.mxu0 0.0
    %221 = vmatpush2.msra.mxu0 0.0
    %222 = vmatprep.subr.mxu0 0.0
    %223 = vmatpush2.msra.mxu0 0.0
    %224 = vmatprep.subr.mxu0 0.0
    %225 = vmatpush2.msra.mxu0 0.0
    %226 = vmatprep.subr.mxu0 0.0
    %227 = vmatpush2.msra.mxu0 0.0
    %228 = vmatprep.subr.mxu0 0.0
    %229 = vmatpush2.msra.mxu0 0.0
    %230 = vmatprep.subr.mxu0 0.0
    %231 = vmatpush2.msra.mxu0 0.0
    %232 = vmatprep.subr.mxu0 0.0
    %233 = vmatpush2.msra.mxu0 0.0
    %234 = vmatprep.subr.mxu0 0.0
    %235 = vmatpush2.msra.mxu0 0.0
    %236 = vmatprep.subr.mxu0 0.0
    %237 = vmatpush2.msra.mxu0 0.0
    %238 = vmatprep.subr.mxu0 0.0
    %239 = vmatpush2.msra.mxu0 0.0
    %240 = vmatprep.subr.mxu0 0.0
    %241 = vmatpush2.msra.mxu0 0.0
    %242 = vmatprep.mubr.f32.mxu0 0.0
    %243 = vmatmul.mubr.f32.gmra.mxu0 %v154
    %v244 = vpop.f32.mrf.mxu0
    %v245 = vadd.f32 %v176, %v244
    %v246 = vpop.f32.mrf.mxu0
    %247 = vdwg.mxu0
    %248 = vst [vmem:[#allocation8] sm:$0xff] %v245
    // Predicated region
    $region34: #{tpu_custom_call.1} parent=1 // pred_check
      _
    $region35: #{tpu_custom_call.1} parent=1 // pred_check_branch
      %250 = sbr.rel (0) target = $region37
    $region36: #{tpu_custom_call.1} parent=1 // pred_region
      %s252 = ssub.s32 128, 128
      %253 = vsyncadd [#allocation4], %s252
      %s255 = sshll.u32 [#allocation8], 4
      %s256 = int_to_ptr.vmem [resolvable:$true] %s255
      %258 = dma.vmem_to_hbm [thread:$0]  %s256, 128, %s5, [#allocation4]
    $region37: #{tpu_custom_call.1} parent=1 // pred_fallthru
      _
    // Predicated region
    $region38: #{tpu_custom_call.1} parent=1 // pred_check
      _
    $region39: #{tpu_custom_call.1} parent=1 // pred_check_branch
      %260 = sbr.rel (0) target = $region41
    $region40: #{tpu_custom_call.1} parent=1 // pred_region
      %261 = dma.done [#allocation4], 128
    $region41: #{tpu_custom_call.1} parent=1 // pred_fallthru
      _
    %262 = vsyncpa [#allocation3], 1
    %263 = vsyncpa [#allocation6], 1
    %264 = vsyncpa [#allocation4], 1

</llo_original>
